<compile_context>
chip_gen: v6e
topology: v6e:2x2x1
jax: 0.10.0
libtpu: 0.0.40
codegen_flags: <defaults>
</compile_context>

<pallas_src>
import numpy as np
import jax
import jax.numpy as jnp
from jax.experimental import pallas as pl
from jax.experimental.pallas import tpu as pltpu


# ------------------------------------------------------------------ graph ----
def k_adjacency(A, k, with_self=False, self_factor=1):
    I = np.eye(len(A), dtype=A.dtype)
    if k == 0:
        return I
    Ak = (np.minimum(np.linalg.matrix_power(A + I, k), 1)
          - np.minimum(np.linalg.matrix_power(A + I, k - 1), 1))
    if with_self:
        Ak = Ak + self_factor * I
    return Ak


def normalize_adjacency_matrix(A):
    node_degrees = A.sum(-1)
    degs_inv_sqrt = np.power(node_degrees, -0.5)
    norm_degs_matrix = np.eye(len(node_degrees)) * degs_inv_sqrt
    return (norm_degs_matrix @ A @ norm_degs_matrix).astype(np.float32)


def build_spatial_temporal_graph(A_binary, window_size):
    A_binary_with_I = A_binary + np.eye(len(A_binary), dtype=A_binary.dtype)
    return np.tile(A_binary_with_I, (window_size, window_size)).copy()


def build_A_scales(A_binary, num_scales, window_size):
    A = build_spatial_temporal_graph(A_binary, window_size)
    A_scales = [k_adjacency(A, k, with_self=True) for k in range(num_scales)]
    A_scales = np.concatenate([normalize_adjacency_matrix(g) for g in A_scales])
    return A_scales.astype(np.float32)          # (num_scales * V, V)


# ---------------------------------------------------------------- helpers ----
def _pad_node_dim(v):
    """Smallest Vp >= v with 128 % Vp == 0 or Vp % 128 == 0 (lane alignment)."""
    if v > 128:
        return ((v + 127) // 128) * 128
    p = 1
    while p < v:
        p *= 2
    return p


def _vmem_budget_bytes():
    """Per-generation VMEM budget with headroom for compiler-internal scratch.

    ~54 MiB on v7x (64 MiB physical), ~100 MiB on v5e/v6e (128 MiB physical);
    conservative 54 MiB fallback if the hardware query is unavailable.
    """
    cap = 64 * 1024 * 1024
    try:
        info = pltpu.get_tpu_info()
        cap = int(getattr(info, "vmem_capacity_bytes", cap))
    except Exception:
        pass
    return min(int(cap * 0.85), 100 * 1024 * 1024)


def _choose_t_tile(N, Tp, Vp, C, Co, S, G, g, budget):
    """Largest T-tile (multiple of g, divisor of Tp) whose blocks fit VMEM."""
    n_groups = Tp // g
    best = g
    for m in range(n_groups, 0, -1):
        if n_groups % m != 0:
            continue
        tT = m * g
        L = tT * Vp
        need = (2 * (C * L * 2 + Co * L * 4)                       # x/out, 2 bufs
                + 2 * (S * G * G * 2 + S * Co * C * 2 + Co * 128 * 4)  # consts, assume 2 bufs
                + (4 << 20))                                        # compiler scratch headroom
        if need <= budget:
            best = tT
            break
    # v7x megacore (2 TensorCores): keep >= 2 parallel grid steps when possible.
    while N * (Tp // best) < 2:
        half = best // 2
        if half >= g and half % g == 0 and Tp % half == 0:
            best = half
        else:
            break
    return best


# ----------------------------------------------------------------- kernel ----
def st_msgcn_kernel(x_ref, bd_ref, w_ref, bias_ref, o_ref):
    # x_ref:    (1, C, L)   bf16 lane-dense (t, v) slab, L = tT * Vp
    # bd_ref:   (S, G, G)   bf16 grouped block-diag I_g (x) A_s^T, G = g * Vp
    # w_ref:    (S, Co, C)  bf16 1x1 conv weight with BN scale folded in
    # bias_ref: (Co, 1)     f32 folded conv bias + BN shift
    # o_ref:    (1, Co, L)  f32 lane-dense output tile
    S, G, _ = bd_ref.shape
    Co = w_ref.shape[1]
    L = x_ref.shape[2]
    bias = bias_ref[...]                                          # (Co, 1)

    # Static lane-chunk loop: each chunk is one (C, G) slab of g time steps.
    for j in range(L // G):
        sl = pl.ds(j * G, G)
        x_c = x_ref[0, :, sl]                                     # (C, G) bf16
        y = jnp.zeros((Co, G), jnp.float32)
        for s in range(S):                                        # per-scale accumulate
            # Node aggregation for scale s (one small lane-dense MXU matmul).
            agg = jnp.dot(x_c, bd_ref[s],
                          preferred_element_type=jnp.float32)     # (C, G) f32
            # 1x1 conv contribution of scale s, accumulated in f32.
            y = y + jnp.dot(w_ref[s], agg.astype(jnp.bfloat16),
                            preferred_element_type=jnp.float32)   # (Co, G)
        # Fused epilogue: folded bias + ReLU, unmasked lane-dense store.
        o_ref[0, :, sl] = jnp.maximum(y + bias, 0.0).astype(o_ref.dtype)


# ---------------------------------------------------------- parameter prep ---
def prepare_st_msgcn_params(A_total, W, conv_bias, gamma, beta,
                            running_mean, running_var, num_nodes,
                            num_frames=None, eps=1e-5):
    """Build per-call-invariant kernel operands once (hoisted out of forward).

    Returns (bd, w_g, bias, g, Vp):
      bd   (S, G, G)  bf16  grouped block-diagonal aggregation operator
      w_g  (S, Co, C) bf16  BN-scaled 1x1 conv weight, scale-major leading axis
      bias (Co, 1)    f32   folded conv bias + BN shift
    """
    V = num_nodes
    SV, V2 = A_total.shape
    assert V2 == V
    S = SV // V
    Co, SC = W.shape
    C = SC // S

    Vp = _pad_node_dim(V)
    g = max(1, 128 // Vp)                     # g * Vp ~= 128 lanes per chunk
    if num_frames is not None:
        g = max(1, min(g, num_frames))        # tiny-T: one chunk spans all frames
    G = g * Vp

    # Zero-pad per-scale adjacencies to (Vp, Vp); padded nodes stay inert.
    A3 = A_total.reshape(S, V, V)
    if Vp != V:
        A3 = jnp.pad(A3, ((0, 0), (0, Vp - V), (0, Vp - V)))
    A3T = jnp.transpose(A3, (0, 2, 1))                            # A_s^T

    # Grouped block-diagonal BD_s = I_g (x) A_s^T — size independent of the T tile.
    eye_g = jnp.eye(g, dtype=A3T.dtype)
    bd = jnp.einsum('ab,suv->saubv', eye_g, A3T).reshape(S, G, G)

    # Fold eval-mode BatchNorm into the 1x1 conv weight / bias.
    # TODO(synk): training-mode BN (batch statistics) is not replicated;
    #             BN is applied in eval mode with running stats.
    scale = gamma / jnp.sqrt(running_var + eps)                   # (Co,)
    w_scaled = W * scale[:, None]                                 # (Co, S*C)
    w_g = jnp.transpose(w_scaled.reshape(Co, S, C), (1, 0, 2))    # (S, Co, C)
    bias = ((conv_bias - running_mean) * scale + beta).reshape(Co, 1)

    return (bd.astype(jnp.bfloat16), w_g.astype(jnp.bfloat16),
            bias.astype(jnp.float32), g, Vp)


# ---------------------------------------------------------------- wrapper ----
def spatial_temporal_ms_gcn(x, bd, w_g, bias, g, Vp, t_tile=None):
    """x: (N, C, T, V) float32 NCHW. Returns (N, Co, T, V) float32."""
    N, C, T, V = x.shape
    S, G, _ = bd.shape
    Co = w_g.shape[1]
    assert G == g * Vp

    # Pad time to a multiple of g and nodes to Vp (zeros; sliced off below).
    Tp = ((T + g - 1) // g) * g
    if Tp != T or Vp != V:
        x = jnp.pad(x, ((0, 0), (0, 0), (0, Tp - T), (0, Vp - V)))

    # NCHW consumed directly; (N,C,Tp,Vp)->(N,C,Tp*Vp) is metadata-only.
    # bf16 operands halve DMA bytes / VMEM; accumulation stays f32 in-kernel.
    x3 = x.reshape(N, C, Tp * Vp).astype(jnp.bfloat16)

    budget = _vmem_budget_bytes()
    tT = _choose_t_tile(N, Tp, Vp, C, Co, S, G, g, budget) if t_tile is None else t_tile
    assert tT % g == 0 and Tp % tT == 0
    L = tT * Vp                               # tile lane width (full extent or %128==0)

    grid = (N, Tp // tT)

    out = pl.pallas_call(
        st_msgcn_kernel,
        out_shape=jax.ShapeDtypeStruct((N, Co, Tp * Vp), jnp.float32),
        grid_spec=pltpu.PrefetchScalarGridSpec(
            num_scalar_prefetch=0,
            grid=grid,
            in_specs=[
                pl.BlockSpec((1, C, L), lambda n, t: (n, 0, t)),
                pl.BlockSpec((S, G, G), lambda n, t: (0, 0, 0)),
                pl.BlockSpec((S, Co, C), lambda n, t: (0, 0, 0)),
                pl.BlockSpec((Co, 1), lambda n, t: (0, 0)),
            ],
            out_specs=pl.BlockSpec((1, Co, L), lambda n, t: (n, 0, t)),
        ),
        compiler_params=pltpu.CompilerParams(
            dimension_semantics=("parallel", "parallel"),
            vmem_limit_bytes=int(budget)),
    )(x3, bd, w_g, bias)

    out = out.reshape(N, Co, Tp, Vp)          # free reshape back to NCHW
    if Tp != T or Vp != V:
        out = out[:, :, :T, :V]
    return out


# --------------------------------------------------------------- reference ---
def reference_forward(x, A_total, W, conv_bias, gamma, beta,
                      running_mean, running_var, num_scales, eps=1e-5):
    N, C, T, V = x.shape
    agg = jnp.einsum('vu,nctu->nctv', A_total, x)              # (N,C,T,S*V)
    agg = agg.reshape(N, C, T, num_scales, V)
    agg = jnp.transpose(agg, (0, 3, 1, 2, 4)).reshape(N, num_scales * C, T, V)
    conv = jnp.einsum('om,nmtv->notv', W, agg) + conv_bias[None, :, None, None]
    bn = ((conv - running_mean[None, :, None, None])
          / jnp.sqrt(running_var + eps)[None, :, None, None]
          * gamma[None, :, None, None] + beta[None, :, None, None])
    return jnp.maximum(bn, 0.0)


# ------------------------------------------------------------------- main ----
if __name__ == "__main__":
    # Small, module-consistent sizes.
    N, C_in, C_out = 2, 4, 8
    V_base, window_size, num_scales = 4, 2, 2
    V = V_base * window_size        # x's node axis = window_size * |A_binary|
    T = 8

    # Simple 4-node path graph (symmetric, binary).
    A_binary = np.zeros((V_base, V_base), dtype=np.float32)
    for a, b in [(0, 1), (1, 2), (2, 3)]:
        A_binary[a, b] = 1.0
        A_binary[b, a] = 1.0

    A_scales = build_A_scales(A_binary, num_scales, window_size)   # (S*V, V)

    key = jax.random.PRNGKey(0)
    k_x, k_w, k_b, k_ares = jax.random.split(key, 4)

    x = jax.random.normal(k_x, (N, C_in, T, V), dtype=jnp.float32)

    # Parameters (deterministic, shapes per module __init__).
    W = jax.random.normal(k_w, (C_out, num_scales * C_in), dtype=jnp.float32) * 0.1
    conv_bias = jax.random.normal(k_b, (C_out,), dtype=jnp.float32) * 0.1
    gamma = jnp.ones((C_out,), jnp.float32)          # BatchNorm2d defaults
    beta = jnp.zeros((C_out,), jnp.float32)
    running_mean = jnp.zeros((C_out,), jnp.float32)
    running_var = jnp.ones((C_out,), jnp.float32)
    A_res = jax.random.uniform(k_ares, A_scales.shape, jnp.float32,
                               minval=-1e-6, maxval=1e-6)
    A_total = jnp.asarray(A_scales) + A_res          # (S*V, V)

    # Per-call-invariant operands built once (hoisted out of the forward path).
    bd, w_g, bias, g, Vp = prepare_st_msgcn_params(
        A_total, W, conv_bias, gamma, beta, running_mean, running_var,
        num_nodes=V, num_frames=T)

    out = spatial_temporal_ms_gcn(x, bd, w_g, bias, g, Vp)
    out = jax.block_until_ready(out)

    ref = reference_forward(x, A_total, W, conv_bias, gamma, beta,
                            running_mean, running_var, num_scales)
    ref = jax.block_until_ready(ref)

    assert out.shape == (N, C_out, T, V)
    # bf16 operands with f32 accumulation: ~1e-2 relative agreement expected.
    np.testing.assert_allclose(np.asarray(out), np.asarray(ref),
                               rtol=2e-2, atol=2e-2)
    print("KERNEL_OK")
</pallas_src>

<mosaic_0001>
module attributes {stable_mosaic.version = 11 : i64} {
  func.func @st_msgcn_kernel(%arg0: i32, %arg1: i32, %arg2: memref<1x4x64xbf16, #tpu.memory_space<vmem>>, %arg3: memref<2x64x64xbf16, #tpu.memory_space<vmem>>, %arg4: memref<2x8x4xbf16, #tpu.memory_space<vmem>>, %arg5: memref<8x1xf32, #tpu.memory_space<vmem>>, %arg6: memref<1x8x64xf32, #tpu.memory_space<vmem>>) attributes {dimension_semantics = [#tpu.dimension_semantics<parallel>, #tpu.dimension_semantics<parallel>], iteration_bounds = array<i64: 2, 1>, scalar_prefetch = 0 : i64, scratch_operands = 0 : i64, tpu.core_type = #tpu.core_type<tc>, window_params = [{transform_indices = @transform_0, window_bounds = array<i64: 1, 4, 64>}, {pipeline_mode = #tpu.pipeline_mode<synchronous>, transform_indices = @transform_1, window_bounds = array<i64: 2, 64, 64>}, {pipeline_mode = #tpu.pipeline_mode<synchronous>, transform_indices = @transform_2, window_bounds = array<i64: 2, 8, 4>}, {pipeline_mode = #tpu.pipeline_mode<synchronous>, transform_indices = @transform_3, window_bounds = array<i64: 8, 1>}, {transform_indices = @transform_4, window_bounds = array<i64: 1, 8, 64>}]} {
    %c0 = arith.constant 0 : index
    %c0_0 = arith.constant 0 : index
    %0 = vector.load %arg5[%c0, %c0_0] : memref<8x1xf32, #tpu.memory_space<vmem>>, vector<8x1xf32>
    %c0_1 = arith.constant 0 : index
    %c0_2 = arith.constant 0 : index
    %c0_3 = arith.constant 0 : index
    %1 = vector.load %arg2[%c0_1, %c0_2, %c0_3] : memref<1x4x64xbf16, #tpu.memory_space<vmem>>, vector<1x4x64xbf16>
    %2 = vector.shape_cast %1 : vector<1x4x64xbf16> to vector<4x64xbf16>
    %cst = arith.constant 0.000000e+00 : f32
    %3 = vector.broadcast %cst : f32 to vector<8x64xf32>
    %c0_4 = arith.constant 0 : index
    %c0_5 = arith.constant 0 : index
    %c0_6 = arith.constant 0 : index
    %4 = vector.load %arg3[%c0_4, %c0_5, %c0_6] : memref<2x64x64xbf16, #tpu.memory_space<vmem>>, vector<1x64x64xbf16>
    %5 = vector.shape_cast %4 : vector<1x64x64xbf16> to vector<64x64xbf16>
    %cst_7 = arith.constant dense<0.000000e+00> : vector<4x64xf32>
    %6 = tpu.matmul %2, %5, %cst_7 {dimension_numbers = #tpu.dot_dimension_numbers<[1], [0], [0], [1], [0, 0, 1, 1], [], []>} : vector<4x64xbf16>, vector<64x64xbf16>, vector<4x64xf32> -> vector<4x64xf32>
    %c0_8 = arith.constant 0 : index
    %c0_9 = arith.constant 0 : index
    %c0_10 = arith.constant 0 : index
    %7 = vector.load %arg4[%c0_8, %c0_9, %c0_10] : memref<2x8x4xbf16, #tpu.memory_space<vmem>>, vector<1x8x4xbf16>
    %8 = vector.shape_cast %7 : vector<1x8x4xbf16> to vector<8x4xbf16>
    %9 = arith.truncf %6 : vector<4x64xf32> to vector<4x64xbf16>
    %cst_11 = arith.constant dense<0.000000e+00> : vector<8x64xf32>
    %10 = tpu.matmul %8, %9, %cst_11 {dimension_numbers = #tpu.dot_dimension_numbers<[1], [0], [0], [1], [0, 0, 1, 1], [], []>} : vector<8x4xbf16>, vector<4x64xbf16>, vector<8x64xf32> -> vector<8x64xf32>
    %11 = arith.addf %3, %10 : vector<8x64xf32>
    %c1 = arith.constant 1 : index
    %c0_12 = arith.constant 0 : index
    %c0_13 = arith.constant 0 : index
    %12 = vector.load %arg3[%c1, %c0_12, %c0_13] : memref<2x64x64xbf16, #tpu.memory_space<vmem>>, vector<1x64x64xbf16>
    %13 = vector.shape_cast %12 : vector<1x64x64xbf16> to vector<64x64xbf16>
    %cst_14 = arith.constant dense<0.000000e+00> : vector<4x64xf32>
    %14 = tpu.matmul %2, %13, %cst_14 {dimension_numbers = #tpu.dot_dimension_numbers<[1], [0], [0], [1], [0, 0, 1, 1], [], []>} : vector<4x64xbf16>, vector<64x64xbf16>, vector<4x64xf32> -> vector<4x64xf32>
    %c1_15 = arith.constant 1 : index
    %c0_16 = arith.constant 0 : index
    %c0_17 = arith.constant 0 : index
    %15 = vector.load %arg4[%c1_15, %c0_16, %c0_17] : memref<2x8x4xbf16, #tpu.memory_space<vmem>>, vector<1x8x4xbf16>
    %16 = vector.shape_cast %15 : vector<1x8x4xbf16> to vector<8x4xbf16>
    %17 = arith.truncf %14 : vector<4x64xf32> to vector<4x64xbf16>
    %cst_18 = arith.constant dense<0.000000e+00> : vector<8x64xf32>
    %18 = tpu.matmul %16, %17, %cst_18 {dimension_numbers = #tpu.dot_dimension_numbers<[1], [0], [0], [1], [0, 0, 1, 1], [], []>} : vector<8x4xbf16>, vector<4x64xbf16>, vector<8x64xf32> -> vector<8x64xf32>
    %19 = arith.addf %11, %18 : vector<8x64xf32>
    %20 = vector.broadcast %0 : vector<8x1xf32> to vector<8x64xf32>
    %21 = arith.addf %19, %20 : vector<8x64xf32>
    %cst_19 = arith.constant 0.000000e+00 : f32
    %22 = vector.broadcast %cst_19 : f32 to vector<8x64xf32>
    %23 = arith.maximumf %21, %22 : vector<8x64xf32>
    %c0_20 = arith.constant 0 : index
    %c0_21 = arith.constant 0 : index
    %c0_22 = arith.constant 0 : index
    %24 = vector.load %arg6[%c0_20, %c0_21, %c0_22] : memref<1x8x64xf32, #tpu.memory_space<vmem>>, vector<1x8x64xf32>
    %25 = vector.shape_cast %24 : vector<1x8x64xf32> to vector<8x64xf32>
    %26 = vector.shape_cast %23 : vector<8x64xf32> to vector<1x8x64xf32>
    tpu.vector_store %arg6[%c0_20, %c0_21, %c0_22], %26 {strides = array<i32>} : memref<1x8x64xf32, #tpu.memory_space<vmem>>, vector<1x8x64xf32>,
    return
  }
  func.func @transform_0(%arg0: i32, %arg1: i32) -> (i32, i32, i32) {
    %c0_i32 = arith.constant 0 : i32
    %c0_i32_0 = arith.constant 0 : i32
    return %arg0, %c0_i32, %arg1 : i32, i32, i32
  }
  func.func @transform_1(%arg0: i32, %arg1: i32) -> (i32, i32, i32) {
    %c0_i32 = arith.constant 0 : i32
    %c0_i32_0 = arith.constant 0 : i32
    %c0_i32_1 = arith.constant 0 : i32
    %c0_i32_2 = arith.constant 0 : i32
    return %c0_i32, %c0_i32_0, %c0_i32_1 : i32, i32, i32
  }
  func.func @transform_2(%arg0: i32, %arg1: i32) -> (i32, i32, i32) {
    %c0_i32 = arith.constant 0 : i32
    %c0_i32_0 = arith.constant 0 : i32
    %c0_i32_1 = arith.constant 0 : i32
    %c0_i32_2 = arith.constant 0 : i32
    return %c0_i32, %c0_i32_0, %c0_i32_1 : i32, i32, i32
  }
  func.func @transform_3(%arg0: i32, %arg1: i32) -> (i32, i32) {
    %c0_i32 = arith.constant 0 : i32
    %c0_i32_0 = arith.constant 0 : i32
    %c0_i32_1 = arith.constant 0 : i32
    return %c0_i32, %c0_i32_0 : i32, i32
  }
  func.func @transform_4(%arg0: i32, %arg1: i32) -> (i32, i32, i32) {
    %c0_i32 = arith.constant 0 : i32
    %c0_i32_0 = arith.constant 0 : i32
    return %arg0, %c0_i32, %arg1 : i32, i32, i32
  }
}

</mosaic_0001>

<llo_original>
// kernel: tpu_custom_call.1
$region0: #{tpu_custom_call.1}
  #allocation0 [shape = 'u32[]', space=smem, size = 0x4, offset = 0x4, fixed_abs, tag = 'smem constant byte address 0x4 - core index']
  #allocation1 [shape = 'u32[144,128]{1,0:T(1,128)}', space=vmem, size = 0x12000, scoped, tag = 'internal scratch']
  %s0 = inlined_call_operand.vmem [shape: bf16[2,4,64], index: 0, kind: input, shape index: {}]
  %s1 = inlined_call_operand.hbm [shape: bf16[2,64,64], index: 1, kind: input, shape index: {}]
  %s2 = inlined_call_operand.vmem [shape: bf16[2,8,4], index: 2, kind: input, shape index: {}]
  %s3 = inlined_call_operand.vmem [shape: f32[8,1], index: 3, kind: input, shape index: {}]
  %s4 = inlined_call_operand.hbm [shape: f32[2,8,64], index: 4, kind: output, shape index: {}]
  %s5 = sld [smem:[#allocation0]]
  $region53: #{tpu_custom_call.1} parent=0
    _
  %s7 = ssub.s32 1, %s5
  %s8 = scalar_select 0, %s7, %s5
  $region1: #{tpu_custom_call.1} parent=0
    #allocation2 [shape = 'u8[32768]{0}', space=vmem, size = 0x8000, scoped, tag = 'input window, operand 1, single buffered']
    #allocation3 [shape = 's32[2]{0}', space=sflag, size = 0x8, scoped, tag = 'scoped memory for tpu_custom_call.1']
    #allocation4 [shape = 's32[2]{0}', space=sflag, size = 0x8, scoped, tag = 'scoped memory for tpu_custom_call.1']
    #allocation5 [shape = 'u8[8192]{0}', space=vmem, size = 0x2000, scoped, tag = 'output window, operand 0']
    %9 = vsyncpa [#allocation3], 0
    %10 = vsyncpa [#allocation4], 0
    %s11 = scalar_lea.sflag [#allocation4], 1
    %12 = vsyncpa %s11, 0
    loop: start=0, step=1, limit=4
    $region2: #{tpu_custom_call.1} parent=1 // loop_pre_header
      _
    $region3: #{tpu_custom_call.1} parent=1 // loop_header
      %s14 = sphi 0, %s18
      %p15 = scmp.ge.s32.totalorder %s14, 4
      %s21 = sphi 0, %s33
      %s22 = sphi 0, %s29
      %s23 = sphi 0, %s21
      %s24 = sphi 0, %s22
      %s25 = sphi 0, %s23
      %s26 = sphi 0, %s24
      %s38 = sphi 0, %s40
      %s41 = sphi 0, %s38
      %s42 = sphi 0, %s41
      %s58 = sphi 0, %s42
      %s62 = sphi 0, %s62
      %s64 = sphi 0, %s62
      %s65 = sphi 0, %s64
      %s79 = sphi 0, %s65
      %s83 = sphi 0, %s83
      %s85 = sphi 0, %s83
      %s86 = sphi 0, %s85
      %s100 = sphi 0, %s86
      %s104 = sphi 0, %s104
      %s106 = sphi 0, %s104
      %s107 = sphi 0, %s106
      %s121 = sphi 0, %s107
      %s129 = sphi 0, %s131
      %s132 = sphi 0, %s129
      %s133 = sphi 0, %s132
      %s149 = sphi 0, %s133
    $region4: #{tpu_custom_call.1} parent=1 // loop_header_branch
      %17 = sbr.rel (%p15) target = $region8
    $region5: #{tpu_custom_call.1} parent=1 // loop_body
      %s19 = ssub.s32 %s14, 1
      %s20 = ssub.s32 %s14, 2
      %s27 = sadd.s32 1, %s22
      %p28 = scmp.ge.s32.totalorder %s27, 1
      %s29 = scalar_select %p28, 0, %s27
      %s30 = sadd.s32 1, %s21
      %s31 = scalar_select %p28, %s30, %s21
      %p32 = scmp.ge.s32.totalorder %s31, 2
      %s33 = scalar_select %p32, 0, %s31
      %s34 = ssub.s32 %s21, %s33
      %s35 = ssub.s32 %s22, %s29
      %s36 = sor.u32 %s34, %s35
      %p37 = scmp.eq.s32.totalorder %s36, 0
      %s39 = sadd.s32 %s38, 1
      %s40 = scalar_select %p37, %s38, %s39
      %p43 = pneg %p37
      %p44 = scmp.eq.s32.totalorder %s14, 1
      %p45 = por %p43, %p44
      %p46 = scmp.ne.s32.totalorder %s38, %s41
      %p47 = scmp.eq.s32.totalorder %s14, 0
      %p48 = por %p46, %p47
      %p49 = scmp.ne.s32.totalorder %s38, %s41
      %p50 = scmp.eq.s32.totalorder %s19, 1
      %p51 = por %p49, %p50
      %p52 = scmp.ne.s32.totalorder %s41, %s42
      %p53 = scmp.eq.s32.totalorder %s19, 0
      %p54 = por %p52, %p53
      %p55 = scmp.ne.s32.totalorder %s41, %s42
      %p56 = scmp.eq.s32.totalorder %s20, 1
      %p57 = por %p55, %p56
      %p59 = scmp.ne.s32.totalorder %s42, %s58
      %p60 = scmp.eq.s32.totalorder %s20, 0
      %p61 = por %p59, %p60
      %s63 = sadd.s32 %s62, 1
      %p66 = scmp.eq.s32.totalorder %s14, 1
      %p67 = scmp.ne.s32.totalorder %s62, %s64
      %p68 = scmp.eq.s32.totalorder %s14, 0
      %p69 = por %p67, %p68
      %p70 = scmp.ne.s32.totalorder %s62, %s64
      %p71 = scmp.eq.s32.totalorder %s19, 1
      %p72 = por %p70, %p71
      %p73 = scmp.ne.s32.totalorder %s64, %s65
      %p74 = scmp.eq.s32.totalorder %s19, 0
      %p75 = por %p73, %p74
      %p76 = scmp.ne.s32.totalorder %s64, %s65
      %p77 = scmp.eq.s32.totalorder %s20, 1
      %p78 = por %p76, %p77
      %p80 = scmp.ne.s32.totalorder %s65, %s79
      %p81 = scmp.eq.s32.totalorder %s20, 0
      %p82 = por %p80, %p81
      %s84 = sadd.s32 %s83, 1
      %p87 = scmp.eq.s32.totalorder %s14, 1
      %p88 = scmp.ne.s32.totalorder %s83, %s85
      %p89 = scmp.eq.s32.totalorder %s14, 0
      %p90 = por %p88, %p89
      %p91 = scmp.ne.s32.totalorder %s83, %s85
      %p92 = scmp.eq.s32.totalorder %s19, 1
      %p93 = por %p91, %p92
      %p94 = scmp.ne.s32.totalorder %s85, %s86
      %p95 = scmp.eq.s32.totalorder %s19, 0
      %p96 = por %p94, %p95
      %p97 = scmp.ne.s32.totalorder %s85, %s86
      %p98 = scmp.eq.s32.totalorder %s20, 1
      %p99 = por %p97, %p98
      %p101 = scmp.ne.s32.totalorder %s86, %s100
      %p102 = scmp.eq.s32.totalorder %s20, 0
      %p103 = por %p101, %p102
      %s105 = sadd.s32 %s104, 1
      %p108 = scmp.eq.s32.totalorder %s14, 1
      %p109 = scmp.ne.s32.totalorder %s104, %s106
      %p110 = scmp.eq.s32.totalorder %s14, 0
      %p111 = por %p109, %p110
      %p112 = scmp.ne.s32.totalorder %s104, %s106
      %p113 = scmp.eq.s32.totalorder %s19, 1
      %p114 = por %p112, %p113
      %p115 = scmp.ne.s32.totalorder %s106, %s107
      %p116 = scmp.eq.s32.totalorder %s19, 0
      %p117 = por %p115, %p116
      %p118 = scmp.ne.s32.totalorder %s106, %s107
      %p119 = scmp.eq.s32.totalorder %s20, 1
      %p120 = por %p118, %p119
      %p122 = scmp.ne.s32.totalorder %s107, %s121
      %p123 = scmp.eq.s32.totalorder %s20, 0
      %p124 = por %p122, %p123
      %s125 = ssub.s32 %s21, %s33
      %s126 = ssub.s32 %s22, %s29
      %s127 = sor.u32 %s125, %s126
      %p128 = scmp.eq.s32.totalorder %s127, 0
      %s130 = sadd.s32 %s129, 1
      %s131 = scalar_select %p128, %s129, %s130
      %p134 = pneg %p128
      %p135 = scmp.eq.s32.totalorder %s14, 1
      %p136 = por %p134, %p135
      %p137 = scmp.ne.s32.totalorder %s129, %s132
      %p138 = scmp.eq.s32.totalorder %s14, 0
      %p139 = por %p137, %p138
      %p140 = scmp.ne.s32.totalorder %s129, %s132
      %p141 = scmp.eq.s32.totalorder %s19, 1
      %p142 = por %p140, %p141
      %p143 = scmp.ne.s32.totalorder %s132, %s133
      %p144 = scmp.eq.s32.totalorder %s19, 0
      %p145 = por %p143, %p144
      %p146 = scmp.ne.s32.totalorder %s132, %s133
      %p147 = scmp.eq.s32.totalorder %s20, 1
      %p148 = por %p146, %p147
      %p150 = scmp.ne.s32.totalorder %s133, %s149
      %p151 = scmp.eq.s32.totalorder %s20, 0
      %p152 = por %p150, %p151
      %p153 = scmp.le.s32.totalorder 1, %s14
      %p154 = scmp.lt.s32.totalorder %s14, 3
      %p155 = pnand %p153, %p154
      %p156 = pneg %p155
      // Predicated region
      $region9: #{tpu_custom_call.1} parent=5 // pred_check
        _
      $region10: #{tpu_custom_call.1} parent=5 // pred_check_branch
        %158 = sbr.rel (%p155) target = $region12
      $region11: #{tpu_custom_call.1} parent=5 // pred_region
        %s159 = ssub.s32 %s14, 1
        // Predicated region
        $region13: #{tpu_custom_call.1} parent=11 // pred_check
          %p160 = pneg %p75
        $region14: #{tpu_custom_call.1} parent=11 // pred_check_branch
          %162 = sbr.rel (%p160) target = $region16
        $region15: #{tpu_custom_call.1} parent=11 // pred_region
          %s164 = ssub.s32 1024, 1024
          %165 = vsyncadd [#allocation3], %s164
          %s166 = sshll.u32 [#allocation2], 4
          %s167 = int_to_ptr.vmem [resolvable:$true] %s166
          %172 = dma.hbm_to_vmem [thread:$0]  %s1, 1024, %s167, [#allocation3], 64, 64, 4
        $region16: #{tpu_custom_call.1} parent=11 // pred_fallthru
          _
        // Predicated region
        $region17: #{tpu_custom_call.1} parent=11 // pred_check
          %p173 = pneg %p96
        $region18: #{tpu_custom_call.1} parent=11 // pred_check_branch
          %175 = sbr.rel (%p173) target = $region20
        $region19: #{tpu_custom_call.1} parent=11 // pred_region
          _
        $region20: #{tpu_custom_call.1} parent=11 // pred_fallthru
          _
        // Predicated region
        $region21: #{tpu_custom_call.1} parent=11 // pred_check
          %p176 = pneg %p117
        $region22: #{tpu_custom_call.1} parent=11 // pred_check_branch
          %178 = sbr.rel (%p176) target = $region24
        $region23: #{tpu_custom_call.1} parent=11 // pred_region
          _
        $region24: #{tpu_custom_call.1} parent=11 // pred_fallthru
          _
      $region12: #{tpu_custom_call.1} parent=5 // pred_fallthru
        _
      %p179 = scmp.lt.s32.totalorder %s14, 2
      // Predicated region
      $region25: #{tpu_custom_call.1} parent=5 // pred_check
        %p180 = pneg %p179
      $region26: #{tpu_custom_call.1} parent=5 // pred_check_branch
        %182 = sbr.rel (%p180) target = $region28
      $region27: #{tpu_custom_call.1} parent=5 // pred_region
        // Predicated region
        $region29: #{tpu_custom_call.1} parent=27 // pred_check
          %p183 = pneg %p48
        $region30: #{tpu_custom_call.1} parent=27 // pred_check_branch
          %185 = sbr.rel (%p183) target = $region32
        $region31: #{tpu_custom_call.1} parent=27 // pred_region
          %p186 = scmp.lt.s32.totalorder %s21, 1
          %s187 = scalar_select %p186, %s21, 1
          %p188 = scmp.lt.s32.totalorder %s22, 0
          %s189 = scalar_select %p188, %s22, 0
          %s190 = sadd.s32 %s189, %s187
          %s191 = smul.addr %s190, 2
          %s192 = scalar_lea.vmem %s0, %s191
        $region32: #{tpu_custom_call.1} parent=27 // pred_fallthru
          _
      $region28: #{tpu_custom_call.1} parent=5 // pred_fallthru
        _
      %p193 = scmp.le.s32.totalorder 1, %s14
      %p194 = scmp.lt.s32.totalorder %s14, 3
      %p195 = pnand %p193, %p194
      %p196 = pneg %p195
      // Predicated region
      $region33: #{tpu_custom_call.1} parent=5 // pred_check
        _
      $region34: #{tpu_custom_call.1} parent=5 // pred_check_branch
        %198 = sbr.rel (%p195) target = $region36
      $region35: #{tpu_custom_call.1} parent=5 // pred_region
        %s199 = ssub.s32 %s14, 1
        // Predicated region
        $region37: #{tpu_custom_call.1} parent=35 // pred_check
          %p200 = pneg %p75
        $region38: #{tpu_custom_call.1} parent=35 // pred_check_branch
          %202 = sbr.rel (%p200) target = $region40
        $region39: #{tpu_custom_call.1} parent=35 // pred_region
          %203 = dma.done [#allocation3], 1024
        $region40: #{tpu_custom_call.1} parent=35 // pred_fallthru
          _
        %p204 = scmp.lt.s32.totalorder %s23, 1
        %s205 = scalar_select %p204, %s23, 1
        %p206 = scmp.lt.s32.totalorder %s24, 0
        %s207 = scalar_select %p206, %s24, 0
        %s208 = sadd.s32 %s207, %s205
        %s209 = smul.addr %s208, 2
        %s210 = scalar_lea.vmem %s0, %s209
        %p211 = pneg %p54
        %p212 = pneg %p51
        %p213 = pneg %p75
        %p214 = pneg %p72
        %p215 = pneg %p96
        %p216 = pneg %p93
        %p217 = pneg %p117
        %p218 = pneg %p114
        %p219 = pneg %p145
        %p220 = pneg %p142
        %s221 = sand.u32 %s132, 1
        %s222 = scalar_lea.sflag [#allocation4], %s221
        %s223 = sand.u32 %s132, 1
        %s224 = smul.addr %s223, 8
        %s225 = scalar_lea.vmem [#allocation5], %s224
        %p226 = scmp.lt.s32.totalorder %s23, 1
        %s227 = scalar_select %p226, %s23, 1
        %p228 = scmp.lt.s32.totalorder %s24, 0
        %s229 = scalar_select %p228, %s24, 0
        %s230 = sadd.s32 %s229, %s227
        %s231 = smul.addr %s230, 2
        %s232 = scalar_lea.vmem %s0, %s231
        %v234 = vld [vmem:[%s3] sm:$0xff]
        %v235 = vld [vmem:[%s232] sm:$0x3]
        %v236 = vld [vmem:[#allocation2] sm:$0xf]
        %v237 = vld [vmem:[#allocation2 + $0x4] sm:$0xf]
        %v238 = vld [vmem:[#allocation2 + $0x8] sm:$0xf]
        %v239 = vld [vmem:[#allocation2 + $0xc] sm:$0xf]
        %v240 = vld [vmem:[#allocation2 + $0x10] sm:$0xf]
        %v241 = vld [vmem:[#allocation2 + $0x14] sm:$0xf]
        %v242 = vld [vmem:[#allocation2 + $0x18] sm:$0xf]
        %v243 = vld [vmem:[#allocation2 + $0x1c] sm:$0xf]
        %v252 = vunpack.c.l.b16 %v236
        %v253 = vunpack.c.l.b16 %v237
        %v254 = vunpack.c.l.b16 %v238
        %v255 = vunpack.c.l.b16 %v239
        %v256 = vunpack.c.l.b16 %v240
        %v257 = vunpack.c.l.b16 %v241
        %v258 = vunpack.c.l.b16 %v242
        %v259 = vunpack.c.l.b16 %v243
        %v260 = vpack.c.b16 %v253, %v252
        %v261 = vpack.c.b16 %v255, %v254
        %v262 = vpack.c.b16 %v257, %v256
        %v263 = vpack.c.b16 %v259, %v258
        %vm268 = vcmask 523264
        %v270 = vsel %vm268, %v235, 0
        %272 = vmatprep.subr.bf16.mxu0 0
        %273 = vmatpush1.bf16.msra.mxu0 0
        %274 = vmatprep.subr.bf16.mxu0 0
        %275 = vmatpush1.bf16.msra.mxu0 0
        %276 = vmatprep.subr.bf16.mxu0 0
        %277 = vmatpush1.bf16.msra.mxu0 0
        %278 = vmatprep.subr.bf16.mxu0 0
        %279 = vmatpush1.bf16.msra.mxu0 0
        %280 = vmatprep.subr.bf16.mxu0 0
        %281 = vmatpush1.bf16.msra.mxu0 %v263
        %282 = vmatprep.subr.bf16.mxu0 0
        %283 = vmatpush1.bf16.msra.mxu0 %v262
        %284 = vmatprep.subr.bf16.mxu0 0
        %285 = vmatpush1.bf16.msra.mxu0 %v261
        %286 = vmatprep.subr.bf16.mxu0 0
        %287 = vmatpush1.bf16.msra.mxu0 %v260
        %288 = vmatprep.subr.bf16.mxu0 0
        %289 = vmatpush2.bf16.msra.mxu0 0
        %290 = vmatprep.subr.bf16.mxu0 0
        %291 = vmatpush2.bf16.msra.mxu0 0
        %292 = vmatprep.subr.bf16.mxu0 0
        %293 = vmatpush2.bf16.msra.mxu0 0
        %294 = vmatprep.subr.bf16.mxu0 0
        %295 = vmatpush2.bf16.msra.mxu0 0
        %296 = vmatprep.subr.bf16.mxu0 0
        %297 = vmatpush2.bf16.msra.mxu0 0
        %298 = vmatprep.subr.bf16.mxu0 0
        %299 = vmatpush2.bf16.msra.mxu0 0
        %300 = vmatprep.subr.bf16.mxu0 0
        %301 = vmatpush2.bf16.msra.mxu0 0
        %302 = vmatprep.subr.bf16.mxu0 0
        %303 = vmatpush2.bf16.msra.mxu0 0
        %304 = vmatprep.mubr.bf16.mxu0 0
        %305 = vmatmul.mubr.bf16.gmra.mxu0 %v270
        %v306 = vpop.f32.mrf.mxu0
        %v307 = vadd.f32 0.0, %v306
        %v308 = vpop.f32.mrf.mxu0
        %v309 = vpop.f32.mrf.mxu0
        %v310 = vpop.f32.mrf.mxu0
        %311 = vdwg.mxu0
        %v312 = vld [vmem:[%s2] sm:$0xf]
        %v313 = vpack.c.bf16 %v307, %v307
        %s314 = scalar_lea.vmem [#allocation2], 32
        %v315 = vld [vmem:[%s314] sm:$0xf]
        %v316 = vld [vmem:[%s314 + $0x4] sm:$0xf]
        %v317 = vld [vmem:[%s314 + $0x8] sm:$0xf]
        %v318 = vld [vmem:[%s314 + $0xc] sm:$0xf]
        %v319 = vld [vmem:[%s314 + $0x10] sm:$0xf]
        %v320 = vld [vmem:[%s314 + $0x14] sm:$0xf]
        %v321 = vld [vmem:[%s314 + $0x18] sm:$0xf]
        %v322 = vld [vmem:[%s314 + $0x1c] sm:$0xf]
        %v331 = vunpack.c.l.b16 %v315
        %v332 = vunpack.c.l.b16 %v316
        %v333 = vunpack.c.l.b16 %v317
        %v334 = vunpack.c.l.b16 %v318
        %v335 = vunpack.c.l.b16 %v319
        %v336 = vunpack.c.l.b16 %v320
        %v337 = vunpack.c.l.b16 %v321
        %v338 = vunpack.c.l.b16 %v322
        %v339 = vpack.c.b16 %v332, %v331
        %v340 = vpack.c.b16 %v334, %v333
        %v341 = vpack.c.b16 %v336, %v335
        %v342 = vpack.c.b16 %v338, %v337
        %347 = vmatprep.subr.bf16.mxu0 0
        %348 = vmatpush1.bf16.msra.mxu0 0
        %349 = vmatprep.subr.bf16.mxu0 0
        %350 = vmatpush1.bf16.msra.mxu0 0
        %351 = vmatprep.subr.bf16.mxu0 0
        %352 = vmatpush1.bf16.msra.mxu0 0
        %353 = vmatprep.subr.bf16.mxu0 0
        %354 = vmatpush1.bf16.msra.mxu0 0
        %355 = vmatprep.subr.bf16.mxu0 0
        %356 = vmatpush1.bf16.msra.mxu0 %v342
        %357 = vmatprep.subr.bf16.mxu0 0
        %358 = vmatpush1.bf16.msra.mxu0 %v341
        %359 = vmatprep.subr.bf16.mxu0 0
        %360 = vmatpush1.bf16.msra.mxu0 %v340
        %361 = vmatprep.subr.bf16.mxu0 0
        %362 = vmatpush1.bf16.msra.mxu0 %v339
        %363 = vmatprep.subr.bf16.mxu0 0
        %364 = vmatpush2.bf16.msra.mxu0 0
        %365 = vmatprep.subr.bf16.mxu0 0
        %366 = vmatpush2.bf16.msra.mxu0 0
        %367 = vmatprep.subr.bf16.mxu0 0
        %368 = vmatpush2.bf16.msra.mxu0 0
        %369 = vmatprep.subr.bf16.mxu0 0
        %370 = vmatpush2.bf16.msra.mxu0 0
        %371 = vmatprep.subr.bf16.mxu0 0
        %372 = vmatpush2.bf16.msra.mxu0 0
        %373 = vmatprep.subr.bf16.mxu0 0
        %374 = vmatpush2.bf16.msra.mxu0 0
        %375 = vmatprep.subr.bf16.mxu0 0
        %376 = vmatpush2.bf16.msra.mxu0 0
        %377 = vmatprep.subr.bf16.mxu0 0
        %378 = vmatpush2.bf16.msra.mxu0 0
        %379 = vmatprep.mubr.bf16.mxu0 0
        %380 = vmatmul.mubr.bf16.gmra.mxu0 %v270
        %v381 = vpop.f32.mrf.mxu0
        %v382 = vadd.f32 0.0, %v381
        %v383 = vpop.f32.mrf.mxu0
        %v384 = vpop.f32.mrf.mxu0
        %v385 = vpop.f32.mrf.mxu0
        %386 = vdwg.mxu0
        %s387 = scalar_lea.vmem %s2, 4
        %v388 = vld [vmem:[%s387] sm:$0xf]
        %v389 = vpack.c.bf16 %v382, %v382
        %vm390 = vcmask 31744
        %v392 = vsel %vm390, %v388, 0
        %vm394 = vcmask 1041408
        %v396 = vsel %vm394, %v389, 0
        %398 = vmatprep.subr.bf16.mxu0 0
        %399 = vmatpush1.bf16.msra.mxu0 0
        %400 = vmatprep.subr.bf16.mxu0 0
        %401 = vmatpush1.bf16.msra.mxu0 0
        %402 = vmatprep.subr.bf16.mxu0 0
        %403 = vmatpush1.bf16.msra.mxu0 0
        %404 = vmatprep.subr.bf16.mxu0 0
        %405 = vmatpush1.bf16.msra.mxu0 0
        %406 = vmatprep.subr.bf16.mxu0 0
        %407 = vmatpush1.bf16.msra.mxu0 0
        %408 = vmatprep.subr.bf16.mxu0 0
        %409 = vmatpush1.bf16.msra.mxu0 0
        %410 = vmatprep.subr.bf16.mxu0 0
        %411 = vmatpush1.bf16.msra.mxu0 0
        %412 = vmatprep.subr.bf16.mxu0 0
        %413 = vmatpush1.bf16.msra.mxu0 %v396
        %414 = vmatprep.subr.bf16.mxu0 0
        %415 = vmatpush2.bf16.msra.mxu0 0
        %416 = vmatprep.subr.bf16.mxu0 0
        %417 = vmatpush2.bf16.msra.mxu0 0
        %418 = vmatprep.subr.bf16.mxu0 0
        %419 = vmatpush2.bf16.msra.mxu0 0
        %420 = vmatprep.subr.bf16.mxu0 0
        %421 = vmatpush2.bf16.msra.mxu0 0
        %422 = vmatprep.subr.bf16.mxu0 0
        %423 = vmatpush2.bf16.msra.mxu0 0
        %424 = vmatprep.subr.bf16.mxu0 0
        %425 = vmatpush2.bf16.msra.mxu0 0
        %426 = vmatprep.subr.bf16.mxu0 0
        %427 = vmatpush2.bf16.msra.mxu0 0
        %428 = vmatprep.subr.bf16.mxu0 0
        %429 = vmatpush2.bf16.msra.mxu0 0
        %430 = vmatprep.mubr.bf16.mxu0 0
        %431 = vmatmul.mubr.bf16.gmra.mxu0 %v392
        %v432 = vpop.f32.mrf.mxu0
        %v433 = vadd.f32 0.0, %v432
        %v434 = vpop.f32.mrf.mxu0
        %v435 = vpop.f32.mrf.mxu0
        %v436 = vpop.f32.mrf.mxu0
        %437 = vdwg.mxu0
        %v439 = vsel %vm390, %v312, 0
        %v442 = vsel %vm394, %v313, 0
        %444 = vmatprep.subr.bf16.mxu0 0
        %445 = vmatpush1.bf16.msra.mxu0 0
        %446 = vmatprep.subr.bf16.mxu0 0
        %447 = vmatpush1.bf16.msra.mxu0 0
        %448 = vmatprep.subr.bf16.mxu0 0
        %449 = vmatpush1.bf16.msra.mxu0 0
        %450 = vmatprep.subr.bf16.mxu0 0
        %451 = vmatpush1.bf16.msra.mxu0 0
        %452 = vmatprep.subr.bf16.mxu0 0
        %453 = vmatpush1.bf16.msra.mxu0 0
        %454 = vmatprep.subr.bf16.mxu0 0
        %455 = vmatpush1.bf16.msra.mxu0 0
        %456 = vmatprep.subr.bf16.mxu0 0
        %457 = vmatpush1.bf16.msra.mxu0 0
        %458 = vmatprep.subr.bf16.mxu0 0
        %459 = vmatpush1.bf16.msra.mxu0 %v442
        %460 = vmatprep.subr.bf16.mxu0 0
        %461 = vmatpush2.bf16.msra.mxu0 0
        %462 = vmatprep.subr.bf16.mxu0 0
        %463 = vmatpush2.bf16.msra.mxu0 0
        %464 = vmatprep.subr.bf16.mxu0 0
        %465 = vmatpush2.bf16.msra.mxu0 0
        %466 = vmatprep.subr.bf16.mxu0 0
        %467 = vmatpush2.bf16.msra.mxu0 0
        %468 = vmatprep.subr.bf16.mxu0 0
        %469 = vmatpush2.bf16.msra.mxu0 0
        %470 = vmatprep.subr.bf16.mxu0 0
        %471 = vmatpush2.bf16.msra.mxu0 0
        %472 = vmatprep.subr.bf16.mxu0 0
        %473 = vmatpush2.bf16.msra.mxu0 0
        %474 = vmatprep.subr.bf16.mxu0 0
        %475 = vmatpush2.bf16.msra.mxu0 0
        %476 = vmatprep.mubr.bf16.mxu0 0
        %477 = vmatmul.mubr.bf16.gmra.mxu0 %v439
        %v478 = vpop.f32.mrf.mxu0
        %v479 = vadd.f32 %v433, %v478
        %v480 = vpop.f32.mrf.mxu0
        %v481 = vpop.f32.mrf.mxu0
        %v482 = vpop.f32.mrf.mxu0
        %483 = vdwg.mxu0
        %485 = vset.pattern.permute.xlu0 0
        %486 = vperm.xlu0 %485, %v234
        %v487 = vpop.permute.xlu0 %486
        %v489 = vadd.f32 %v479, %v487
        %v490 = vmax.f32 %v489, 0.0
        %491 = vst.msk [vmem:[%s225] sm:$0xff] %vm268, %v490
        %s492 = sand.u32 %s132, 1
        %s493 = scalar_lea.sflag [#allocation4], %s492
        %s494 = sand.u32 %s132, 1
        %s495 = smul.addr %s494, 8
        %s496 = scalar_lea.vmem [#allocation5], %s495
        // Predicated region
        $region41: #{tpu_custom_call.1} parent=35 // pred_check
          %p497 = pneg %p142
        $region42: #{tpu_custom_call.1} parent=35 // pred_check_branch
          %499 = sbr.rel (%p497) target = $region44
        $region43: #{tpu_custom_call.1} parent=35 // pred_region
          %s501 = ssub.s32 128, 128
          %502 = vsyncadd %s493, %s501
          %s503 = sadd.s32 %s24, %s23
          %s504 = smul.addr %s503, 128
          %s505 = scalar_lea.hbm %s4, %s504
          %s507 = sshll.u32 %s496, 4
          %s508 = int_to_ptr.vmem [resolvable:$true] %s507
          %510 = dma.vmem_to_hbm [thread:$0]  %s508, 128, %s505, %s493
        $region44: #{tpu_custom_call.1} parent=35 // pred_fallthru
          _
      $region36: #{tpu_custom_call.1} parent=5 // pred_fallthru
        _
      %p511 = scmp.le.s32.totalorder 2, %s14
      // Predicated region
      $region45: #{tpu_custom_call.1} parent=5 // pred_check
        %p512 = pneg %p511
      $region46: #{tpu_custom_call.1} parent=5 // pred_check_branch
        %514 = sbr.rel (%p512) target = $region48
      $region47: #{tpu_custom_call.1} parent=5 // pred_region
        %s515 = ssub.s32 %s14, 2
        // Predicated region
        $region49: #{tpu_custom_call.1} parent=47 // pred_check
          %p516 = pneg %p148
        $region50: #{tpu_custom_call.1} parent=47 // pred_check_branch
          %518 = sbr.rel (%p516) target = $region52
        $region51: #{tpu_custom_call.1} parent=47 // pred_region
          %s519 = sand.u32 %s133, 1
          %s520 = scalar_lea.sflag [#allocation4], %s519
          %s521 = sand.u32 %s133, 1
          %s522 = smul.addr %s521, 8
          %s523 = scalar_lea.vmem [#allocation5], %s522
          %524 = dma.done %s520, 128
        $region52: #{tpu_custom_call.1} parent=47 // pred_fallthru
          _
      $region48: #{tpu_custom_call.1} parent=5 // pred_fallthru
        _
    $region6: #{tpu_custom_call.1} parent=1 // loop_footer
      %s18 = sadd.s32 1, %s14
    $region7: #{tpu_custom_call.1} parent=1 // loop_footer_branch
      %13 = sbr.rel target = $region3
    $region8: #{tpu_custom_call.1} parent=1 // loop_exit
      _
    %525 = vsyncpa [#allocation3], 1
    %s526 = scalar_lea.sflag [#allocation3], 1
    %527 = vsyncpa %s526, 1
    %528 = vsyncpa [#allocation4], 1
    %s529 = scalar_lea.sflag [#allocation4], 1
    %530 = vsyncpa %s529, 1

</llo_original>
